<compile_context>
chip_gen: v6e
topology: v6e:2x2x1
jax: 0.10.0
libtpu: 0.0.40
codegen_flags: <defaults>
</compile_context>

<pallas_src>
import functools

import jax
import jax.numpy as jnp
from jax.experimental import pallas as pl
from jax.experimental.pallas import tpu as pltpu


def _round_up(x, m):
    return ((x + m - 1) // m) * m


def _hashnet_kernel(u_ref, y_ref, bank_ref, out_ref,
                    s1_acc, pos_acc, tot_acc, *, bit_rows, cls_rows):
    j = pl.program_id(1)            # reduction step within this parallel chunk
    n_inner = pl.num_programs(1)

    @pl.when(j == 0)
    def _init():
        s1_acc[...] = jnp.zeros_like(s1_acc)
        pos_acc[...] = jnp.zeros_like(pos_acc)
        tot_acc[...] = jnp.zeros_like(tot_acc)

    # Single stacked, lane-dense bank tile: rows [0:bit_rows) = U^T,
    # rows [bit_rows:bit_rows+cls_rows) = Y^T.  Static 16-row-aligned slices.
    u_bank = bank_ref[pl.ds(0, bit_rows), :]            # (bit_rows, tile_n) bf16
    y_bank = bank_ref[pl.ds(bit_rows, cls_rows), :]     # (cls_rows, tile_n) bf16

    # alpha is already folded into u_ref in the wrapper.
    dp = jnp.dot(u_ref[...], u_bank,
                 preferred_element_type=jnp.float32)    # (B, tile_n) f32
    sim_logits = jnp.dot(y_ref[...], y_bank,
                         preferred_element_type=jnp.float32)

    B, tile_n = dp.shape

    # Per-128-lane-group elementwise chain + fold into (B, 128) accumulators:
    # pure VPU/EUP work, single-vreg live ranges, cross-lane/sublane reduction
    # deferred to the end of the chunk.
    s1 = s1_acc[...]
    ps = pos_acc[...]
    ts = tot_acc[...]
    for g in range(tile_n // 128):
        cols = slice(g * 128, (g + 1) * 128)
        d = dp[:, cols]
        pos = sim_logits[:, cols] > 0.0
        el = (jnp.log1p(jnp.exp(-jnp.abs(d)))
              + jnp.maximum(d, 0.0)
              - jnp.where(pos, d, 0.0))
        ts = ts + el
        ps = ps + jnp.where(pos, el, 0.0)
        s1 = s1 + pos.astype(jnp.float32)
    s1_acc[...] = s1
    pos_acc[...] = ps
    tot_acc[...] = ts

    # Flush lane-wide partials once per parallel chunk.
    @pl.when(j == n_inner - 1)
    def _flush():
        out_ref[0, 0:1, :] = jnp.sum(s1_acc[...], axis=0, keepdims=True)
        out_ref[0, 1:2, :] = jnp.sum(pos_acc[...], axis=0, keepdims=True)
        out_ref[0, 2:3, :] = jnp.sum(tot_acc[...], axis=0, keepdims=True)


def init_hashnet_state(num_train, bit, n_class, *, tile_n=8192, n_split=2,
                       dtype=jnp.bfloat16):
    """Zero memory banks (as in HashNetLoss.__init__), stored as one stacked,
    transposed, zero-padded bank:
        rows [0:bit)                       -> U^T
        rows [bit_pad:bit_pad + n_class)   -> Y^T
    with bit_pad / cls_pad rounded up to 16 and columns padded to the tiling."""
    assert tile_n % 128 == 0
    bit_rows = _round_up(bit, 16)
    cls_rows = _round_up(n_class, 16)
    n_pad = _round_up(num_train, n_split * tile_n)
    return jnp.zeros((bit_rows + cls_rows, n_pad), dtype)


def hashnet_loss(u, y, ind, W_T, *, num_train, alpha=0.1, scale=1.0,
                 tile_n=8192, n_split=2):
    """Returns (loss, W_T_new), matching HashNetLoss.forward + its state update.

    W_T is the persistent stacked bank from init_hashnet_state.  Jit this
    function with donate_argnums=(3,) so the bank scatter is in-place."""
    B, bit = u.shape
    n_class = y.shape[1]
    bit_rows = _round_up(bit, 16)
    cls_rows = _round_up(n_class, 16)
    rows, n_pad = W_T.shape
    assert rows == bit_rows + cls_rows, "bank rows must match bit/n_class padding"
    assert tile_n % 128 == 0, "tile_n must be a multiple of 128"
    assert n_pad % (n_split * tile_n) == 0, "bank padding must match tiling"
    n_inner = n_pad // (n_split * tile_n)

    # State update: self.U[ind,:] = tanh(scale*u); self.Y[ind,:] = y.float()
    # (one scatter on the stacked bank; padded rows stay exactly zero).
    u_t = jnp.tanh(scale * u.astype(jnp.float32))
    y_f = y.astype(jnp.float32)
    cols = jnp.zeros((rows, B), jnp.float32)
    cols = cols.at[0:bit, :].set(u_t.T)
    cols = cols.at[bit_rows:bit_rows + n_class, :].set(y_f.T)
    W_T = W_T.at[:, ind].set(cols.astype(W_T.dtype))

    # MXU LHS inputs: alpha folded into the tiny (B, bit) tile, zero-padded to
    # the bank's 16-row groups, cast to the bank dtype (bf16).
    u_in = jnp.zeros((B, bit_rows), W_T.dtype).at[:, 0:bit].set(
        (alpha * u_t).astype(W_T.dtype))
    y_in = jnp.zeros((B, cls_rows), W_T.dtype).at[:, 0:n_class].set(
        y_f.astype(W_T.dtype))

    kernel = functools.partial(_hashnet_kernel, bit_rows=bit_rows,
                               cls_rows=cls_rows)

    # VMEM budget: double-buffered bank tiles + f32 intermediates + headroom,
    # capped at 75% of physical VMEM (48 MiB on v7x, 96 MiB on v5e/v6e).
    try:
        vmem_cap = pltpu.get_tpu_info().vmem_capacity_bytes
    except Exception:
        vmem_cap = 64 * 1024 * 1024
    bank_tile = rows * tile_n * W_T.dtype.itemsize
    interm = 8 * B * tile_n * 4
    budget = 4 * bank_tile + interm + (4 << 20)
    vmem_limit = int(max(16 << 20, min(budget, (vmem_cap * 3) // 4)))

    partials = pl.pallas_call(
        kernel,
        out_shape=jax.ShapeDtypeStruct((n_split, 3, 128), jnp.float32),
        grid_spec=pltpu.PrefetchScalarGridSpec(
            num_scalar_prefetch=0,
            grid=(n_split, n_inner),
            in_specs=[
                pl.BlockSpec((B, bit_rows), lambda c, j: (0, 0)),   # alpha*tanh codes
                pl.BlockSpec((B, cls_rows), lambda c, j: (0, 0)),   # labels
                pl.BlockSpec((rows, tile_n),
                             lambda c, j: (0, c * n_inner + j)),    # stacked bank tile
            ],
            out_specs=pl.BlockSpec((1, 3, 128), lambda c, j: (c, 0, 0)),
            scratch_shapes=[pltpu.VMEM((B, 128), jnp.float32)] * 3,
        ),
        compiler_params=pltpu.CompilerParams(
            dimension_semantics=("parallel", "arbitrary"),
            vmem_limit_bytes=vmem_limit),
    )(u_in, y_in, W_T)

    # Tiny final reduction + reweighting in XLA.
    sums = jnp.sum(partials, axis=(0, 2))          # [S1, pos_sum, tot_sum]
    S1, pos_sum, tot_sum = sums[0], sums[1], sums[2]
    # Zero-padded bank columns contribute exactly ln(2) each to tot_sum
    # (dp = 0, sim = False) and nothing to S1/pos_sum: correct analytically.
    pad_cols = n_pad - num_train
    tot_sum = tot_sum - jnp.float32(B * pad_cols) * jnp.log(jnp.float32(2.0))
    S = jnp.float32(B * num_train)
    S0 = S - S1
    neg_sum = tot_sum - pos_sum
    # Empty masks are a no-op in PyTorch, so guard the reweighting.
    pos_term = jnp.where(S1 > 0, pos_sum * (S / S1), 0.0)
    neg_term = jnp.where(S0 > 0, neg_sum * (S / S0), 0.0)
    loss = (pos_term + neg_term) / S
    return loss, W_T


def _reference_loss(u, y, ind, U, Y, alpha, scale, code_dtype=jnp.float32):
    """Pure-JAX re-implementation of the PyTorch forward (for verification).

    code_dtype=bfloat16 mimics the kernel's bf16 banks / bf16 alpha*u LHS for a
    tight comparison; float32 reproduces the exact PyTorch math."""
    u_t = jnp.tanh(scale * u.astype(jnp.float32))
    U = U.at[ind, :].set(u_t)
    Y = Y.at[ind, :].set(y.astype(jnp.float32))
    Uc = U.astype(code_dtype).astype(jnp.float32)
    Yc = Y.astype(code_dtype).astype(jnp.float32)
    uc = (alpha * u_t).astype(code_dtype).astype(jnp.float32)
    yc = y.astype(jnp.float32).astype(code_dtype).astype(jnp.float32)
    sim = (yc @ Yc.T > 0).astype(jnp.float32)
    dp = uc @ Uc.T
    exp_loss = jnp.log1p(jnp.exp(-jnp.abs(dp))) + jnp.maximum(dp, 0.0) - sim * dp
    pos = sim > 0
    S1 = jnp.sum(pos.astype(jnp.float32))
    S0 = jnp.sum((~pos).astype(jnp.float32))
    S = S0 + S1
    w = jnp.where(pos, S / S1, S / S0)
    return jnp.sum(exp_loss * w) / S


if __name__ == "__main__":
    key = jax.random.PRNGKey(0)

    def run_case(num_train, tile_n, n_split, case_id):
        B, bit, n_class = 8, 16, 8
        alpha, scale = 0.1, 1.0

        k_u, k_y = jax.random.split(jax.random.fold_in(key, case_id))
        u = jax.random.normal(k_u, (B, bit), dtype=jnp.float32)
        labels = jax.random.randint(k_y, (B,), 0, n_class)
        y = jax.nn.one_hot(labels, n_class, dtype=jnp.float32)
        ind = jnp.arange(17 * case_id, 17 * case_id + B, dtype=jnp.int32)

        # Memory banks start at zero, exactly as in HashNetLoss.__init__.
        W0 = init_hashnet_state(num_train, bit, n_class,
                                tile_n=tile_n, n_split=n_split)

        # donate_argnums=(3,) makes the bank scatter in-place (no full copy).
        step = jax.jit(hashnet_loss, donate_argnums=(3,),
                       static_argnames=("num_train", "alpha", "scale",
                                        "tile_n", "n_split"))
        loss, _ = step(u, y, ind, W0, num_train=num_train, alpha=alpha,
                       scale=scale, tile_n=tile_n, n_split=n_split)
        loss = jax.block_until_ready(loss)

        # References with the original PyTorch bank layout.
        U0 = jnp.zeros((num_train, bit), jnp.float32)
        Y0 = jnp.zeros((num_train, n_class), jnp.float32)
        ref_bf16 = jax.block_until_ready(
            _reference_loss(u, y, ind, U0, Y0, alpha, scale,
                            code_dtype=jnp.bfloat16))
        ref_f32 = jax.block_until_ready(
            _reference_loss(u, y, ind, U0, Y0, alpha, scale,
                            code_dtype=jnp.float32))

        # Tight check vs. a bf16-consistent reference; loose vs. exact f32 math.
        assert jnp.allclose(loss, ref_bf16, rtol=2e-3, atol=1e-4), \
            (case_id, loss, ref_bf16)
        assert jnp.allclose(loss, ref_f32, rtol=3e-2, atol=1e-3), \
            (case_id, loss, ref_f32)
        return loss

    # Small, deterministic cases (dataset-sized num_train is what the module
    # implies; tiles sized so padding waste stays small at these sizes).
    run_case(num_train=1000, tile_n=512, n_split=2, case_id=1)   # ragged padding
    run_case(num_train=6000, tile_n=1024, n_split=2, case_id=2)  # multi-step reduction
    print("KERNEL_OK")
</pallas_src>

<mosaic_0001>
module attributes {stable_mosaic.version = 11 : i64} {
  func.func @_hashnet_kernel(%arg0: i32, %arg1: i32, %arg2: memref<8x16xbf16, #tpu.memory_space<vmem>>, %arg3: memref<8x16xbf16, #tpu.memory_space<vmem>>, %arg4: memref<32x512xbf16, #tpu.memory_space<vmem>>, %arg5: memref<1x3x128xf32, #tpu.memory_space<vmem>>, %arg6: memref<8x128xf32, #tpu.memory_space<vmem>>, %arg7: memref<8x128xf32, #tpu.memory_space<vmem>>, %arg8: memref<8x128xf32, #tpu.memory_space<vmem>>) attributes {dimension_semantics = [#tpu.dimension_semantics<parallel>, #tpu.dimension_semantics<arbitrary>], iteration_bounds = array<i64: 2, 1>, scalar_prefetch = 0 : i64, scratch_operands = 3 : i64, tpu.core_type = #tpu.core_type<tc>, window_params = [{pipeline_mode = #tpu.pipeline_mode<synchronous>, transform_indices = @transform_0, window_bounds = array<i64: 8, 16>}, {pipeline_mode = #tpu.pipeline_mode<synchronous>, transform_indices = @transform_1, window_bounds = array<i64: 8, 16>}, {transform_indices = @transform_2, window_bounds = array<i64: 32, 512>}, {transform_indices = @transform_3, window_bounds = array<i64: 1, 3, 128>}]} {
    %c0_i32 = arith.constant 0 : i32
    %0 = arith.cmpi eq, %arg1, %c0_i32 : i32
    %1 = arith.extui %0 : i1 to i32
    %c0_i32_0 = arith.constant 0 : i32
    %2 = arith.cmpi ne, %1, %c0_i32_0 : i32
    scf.if %2 {
      %cst_42 = arith.constant 0.000000e+00 : f32
      %106 = vector.broadcast %cst_42 : f32 to vector<8x128xf32>
      %c0_43 = arith.constant 0 : index
      %c0_44 = arith.constant 0 : index
      %107 = vector.load %arg6[%c0_43, %c0_44] : memref<8x128xf32, #tpu.memory_space<vmem>>, vector<8x128xf32>
      tpu.vector_store %arg6[%c0_43, %c0_44], %106 {strides = array<i32>} : memref<8x128xf32, #tpu.memory_space<vmem>>, vector<8x128xf32>,
      %cst_45 = arith.constant 0.000000e+00 : f32
      %108 = vector.broadcast %cst_45 : f32 to vector<8x128xf32>
      %c0_46 = arith.constant 0 : index
      %c0_47 = arith.constant 0 : index
      %109 = vector.load %arg7[%c0_46, %c0_47] : memref<8x128xf32, #tpu.memory_space<vmem>>, vector<8x128xf32>
      tpu.vector_store %arg7[%c0_46, %c0_47], %108 {strides = array<i32>} : memref<8x128xf32, #tpu.memory_space<vmem>>, vector<8x128xf32>,
      %cst_48 = arith.constant 0.000000e+00 : f32
      %110 = vector.broadcast %cst_48 : f32 to vector<8x128xf32>
      %c0_49 = arith.constant 0 : index
      %c0_50 = arith.constant 0 : index
      %111 = vector.load %arg8[%c0_49, %c0_50] : memref<8x128xf32, #tpu.memory_space<vmem>>, vector<8x128xf32>
      tpu.vector_store %arg8[%c0_49, %c0_50], %110 {strides = array<i32>} : memref<8x128xf32, #tpu.memory_space<vmem>>, vector<8x128xf32>,
    } else {
    }
    %c0 = arith.constant 0 : index
    %c0_1 = arith.constant 0 : index
    %3 = vector.load %arg4[%c0, %c0_1] : memref<32x512xbf16, #tpu.memory_space<vmem>>, vector<16x512xbf16>
    %c16 = arith.constant 16 : index
    %c0_2 = arith.constant 0 : index
    %4 = vector.load %arg4[%c16, %c0_2] : memref<32x512xbf16, #tpu.memory_space<vmem>>, vector<16x512xbf16>
    %c0_3 = arith.constant 0 : index
    %c0_4 = arith.constant 0 : index
    %5 = vector.load %arg2[%c0_3, %c0_4] : memref<8x16xbf16, #tpu.memory_space<vmem>>, vector<8x16xbf16>
    %cst = arith.constant dense<0.000000e+00> : vector<8x512xf32>
    %6 = tpu.matmul %5, %3, %cst {dimension_numbers = #tpu.dot_dimension_numbers<[1], [0], [0], [1], [0, 0, 1, 1], [], []>} : vector<8x16xbf16>, vector<16x512xbf16>, vector<8x512xf32> -> vector<8x512xf32>
    %c0_5 = arith.constant 0 : index
    %c0_6 = arith.constant 0 : index
    %7 = vector.load %arg3[%c0_5, %c0_6] : memref<8x16xbf16, #tpu.memory_space<vmem>>, vector<8x16xbf16>
    %cst_7 = arith.constant dense<0.000000e+00> : vector<8x512xf32>
    %8 = tpu.matmul %7, %4, %cst_7 {dimension_numbers = #tpu.dot_dimension_numbers<[1], [0], [0], [1], [0, 0, 1, 1], [], []>} : vector<8x16xbf16>, vector<16x512xbf16>, vector<8x512xf32> -> vector<8x512xf32>
    %c0_8 = arith.constant 0 : index
    %c0_9 = arith.constant 0 : index
    %9 = vector.load %arg6[%c0_8, %c0_9] : memref<8x128xf32, #tpu.memory_space<vmem>>, vector<8x128xf32>
    %c0_10 = arith.constant 0 : index
    %c0_11 = arith.constant 0 : index
    %10 = vector.load %arg7[%c0_10, %c0_11] : memref<8x128xf32, #tpu.memory_space<vmem>>, vector<8x128xf32>
    %c0_12 = arith.constant 0 : index
    %c0_13 = arith.constant 0 : index
    %11 = vector.load %arg8[%c0_12, %c0_13] : memref<8x128xf32, #tpu.memory_space<vmem>>, vector<8x128xf32>
    %12 = vector.extract_strided_slice %6 {offsets = [0, 0], sizes = [8, 128], strides = [1, 1]} : vector<8x512xf32> to vector<8x128xf32>
    %13 = vector.extract_strided_slice %8 {offsets = [0, 0], sizes = [8, 128], strides = [1, 1]} : vector<8x512xf32> to vector<8x128xf32>
    %cst_14 = arith.constant 0.000000e+00 : f32
    %14 = vector.broadcast %cst_14 : f32 to vector<8x128xf32>
    %15 = arith.cmpf ogt, %13, %14 : vector<8x128xf32>
    %16 = math.absf %12 : vector<8x128xf32>
    %cst_15 = arith.constant 0.000000e+00 : f32
    %17 = vector.broadcast %cst_15 : f32 to vector<8x128xf32>
    %18 = arith.subf %17, %16 : vector<8x128xf32>
    %19 = math.exp %18 : vector<8x128xf32>
    %20 = math.log1p %19 : vector<8x128xf32>
    %cst_16 = arith.constant 0.000000e+00 : f32
    %21 = vector.broadcast %cst_16 : f32 to vector<8x128xf32>
    %22 = arith.maximumf %12, %21 : vector<8x128xf32>
    %23 = arith.addf %20, %22 : vector<8x128xf32>
    %cst_17 = arith.constant 0.000000e+00 : f32
    %24 = vector.broadcast %cst_17 : f32 to vector<8x128xf32>
    %25 = arith.select %15, %12, %24 : vector<8x128xi1>, vector<8x128xf32>
    %26 = arith.subf %23, %25 : vector<8x128xf32>
    %27 = arith.addf %11, %26 : vector<8x128xf32>
    %cst_18 = arith.constant 0.000000e+00 : f32
    %28 = vector.broadcast %cst_18 : f32 to vector<8x128xf32>
    %29 = arith.select %15, %26, %28 : vector<8x128xi1>, vector<8x128xf32>
    %30 = arith.addf %10, %29 : vector<8x128xf32>
    %31 = arith.extui %15 : vector<8x128xi1> to vector<8x128xi32>
    %32 = arith.sitofp %31 : vector<8x128xi32> to vector<8x128xf32>
    %33 = arith.addf %9, %32 : vector<8x128xf32>
    %34 = vector.extract_strided_slice %6 {offsets = [0, 128], sizes = [8, 128], strides = [1, 1]} : vector<8x512xf32> to vector<8x128xf32>
    %35 = vector.extract_strided_slice %8 {offsets = [0, 128], sizes = [8, 128], strides = [1, 1]} : vector<8x512xf32> to vector<8x128xf32>
    %cst_19 = arith.constant 0.000000e+00 : f32
    %36 = vector.broadcast %cst_19 : f32 to vector<8x128xf32>
    %37 = arith.cmpf ogt, %35, %36 : vector<8x128xf32>
    %38 = math.absf %34 : vector<8x128xf32>
    %cst_20 = arith.constant 0.000000e+00 : f32
    %39 = vector.broadcast %cst_20 : f32 to vector<8x128xf32>
    %40 = arith.subf %39, %38 : vector<8x128xf32>
    %41 = math.exp %40 : vector<8x128xf32>
    %42 = math.log1p %41 : vector<8x128xf32>
    %cst_21 = arith.constant 0.000000e+00 : f32
    %43 = vector.broadcast %cst_21 : f32 to vector<8x128xf32>
    %44 = arith.maximumf %34, %43 : vector<8x128xf32>
    %45 = arith.addf %42, %44 : vector<8x128xf32>
    %cst_22 = arith.constant 0.000000e+00 : f32
    %46 = vector.broadcast %cst_22 : f32 to vector<8x128xf32>
    %47 = arith.select %37, %34, %46 : vector<8x128xi1>, vector<8x128xf32>
    %48 = arith.subf %45, %47 : vector<8x128xf32>
    %49 = arith.addf %27, %48 : vector<8x128xf32>
    %cst_23 = arith.constant 0.000000e+00 : f32
    %50 = vector.broadcast %cst_23 : f32 to vector<8x128xf32>
    %51 = arith.select %37, %48, %50 : vector<8x128xi1>, vector<8x128xf32>
    %52 = arith.addf %30, %51 : vector<8x128xf32>
    %53 = arith.extui %37 : vector<8x128xi1> to vector<8x128xi32>
    %54 = arith.sitofp %53 : vector<8x128xi32> to vector<8x128xf32>
    %55 = arith.addf %33, %54 : vector<8x128xf32>
    %56 = vector.extract_strided_slice %6 {offsets = [0, 256], sizes = [8, 128], strides = [1, 1]} : vector<8x512xf32> to vector<8x128xf32>
    %57 = vector.extract_strided_slice %8 {offsets = [0, 256], sizes = [8, 128], strides = [1, 1]} : vector<8x512xf32> to vector<8x128xf32>
    %cst_24 = arith.constant 0.000000e+00 : f32
    %58 = vector.broadcast %cst_24 : f32 to vector<8x128xf32>
    %59 = arith.cmpf ogt, %57, %58 : vector<8x128xf32>
    %60 = math.absf %56 : vector<8x128xf32>
    %cst_25 = arith.constant 0.000000e+00 : f32
    %61 = vector.broadcast %cst_25 : f32 to vector<8x128xf32>
    %62 = arith.subf %61, %60 : vector<8x128xf32>
    %63 = math.exp %62 : vector<8x128xf32>
    %64 = math.log1p %63 : vector<8x128xf32>
    %cst_26 = arith.constant 0.000000e+00 : f32
    %65 = vector.broadcast %cst_26 : f32 to vector<8x128xf32>
    %66 = arith.maximumf %56, %65 : vector<8x128xf32>
    %67 = arith.addf %64, %66 : vector<8x128xf32>
    %cst_27 = arith.constant 0.000000e+00 : f32
    %68 = vector.broadcast %cst_27 : f32 to vector<8x128xf32>
    %69 = arith.select %59, %56, %68 : vector<8x128xi1>, vector<8x128xf32>
    %70 = arith.subf %67, %69 : vector<8x128xf32>
    %71 = arith.addf %49, %70 : vector<8x128xf32>
    %cst_28 = arith.constant 0.000000e+00 : f32
    %72 = vector.broadcast %cst_28 : f32 to vector<8x128xf32>
    %73 = arith.select %59, %70, %72 : vector<8x128xi1>, vector<8x128xf32>
    %74 = arith.addf %52, %73 : vector<8x128xf32>
    %75 = arith.extui %59 : vector<8x128xi1> to vector<8x128xi32>
    %76 = arith.sitofp %75 : vector<8x128xi32> to vector<8x128xf32>
    %77 = arith.addf %55, %76 : vector<8x128xf32>
    %78 = vector.extract_strided_slice %6 {offsets = [0, 384], sizes = [8, 128], strides = [1, 1]} : vector<8x512xf32> to vector<8x128xf32>
    %79 = vector.extract_strided_slice %8 {offsets = [0, 384], sizes = [8, 128], strides = [1, 1]} : vector<8x512xf32> to vector<8x128xf32>
    %cst_29 = arith.constant 0.000000e+00 : f32
    %80 = vector.broadcast %cst_29 : f32 to vector<8x128xf32>
    %81 = arith.cmpf ogt, %79, %80 : vector<8x128xf32>
    %82 = math.absf %78 : vector<8x128xf32>
    %cst_30 = arith.constant 0.000000e+00 : f32
    %83 = vector.broadcast %cst_30 : f32 to vector<8x128xf32>
    %84 = arith.subf %83, %82 : vector<8x128xf32>
    %85 = math.exp %84 : vector<8x128xf32>
    %86 = math.log1p %85 : vector<8x128xf32>
    %cst_31 = arith.constant 0.000000e+00 : f32
    %87 = vector.broadcast %cst_31 : f32 to vector<8x128xf32>
    %88 = arith.maximumf %78, %87 : vector<8x128xf32>
    %89 = arith.addf %86, %88 : vector<8x128xf32>
    %cst_32 = arith.constant 0.000000e+00 : f32
    %90 = vector.broadcast %cst_32 : f32 to vector<8x128xf32>
    %91 = arith.select %81, %78, %90 : vector<8x128xi1>, vector<8x128xf32>
    %92 = arith.subf %89, %91 : vector<8x128xf32>
    %93 = arith.addf %71, %92 : vector<8x128xf32>
    %cst_33 = arith.constant 0.000000e+00 : f32
    %94 = vector.broadcast %cst_33 : f32 to vector<8x128xf32>
    %95 = arith.select %81, %92, %94 : vector<8x128xi1>, vector<8x128xf32>
    %96 = arith.addf %74, %95 : vector<8x128xf32>
    %97 = arith.extui %81 : vector<8x128xi1> to vector<8x128xi32>
    %98 = arith.sitofp %97 : vector<8x128xi32> to vector<8x128xf32>
    %99 = arith.addf %77, %98 : vector<8x128xf32>
    %c0_34 = arith.constant 0 : index
    %c0_35 = arith.constant 0 : index
    %100 = vector.load %arg6[%c0_34, %c0_35] : memref<8x128xf32, #tpu.memory_space<vmem>>, vector<8x128xf32>
    tpu.vector_store %arg6[%c0_34, %c0_35], %99 {strides = array<i32>} : memref<8x128xf32, #tpu.memory_space<vmem>>, vector<8x128xf32>,
    %c0_36 = arith.constant 0 : index
    %c0_37 = arith.constant 0 : index
    %101 = vector.load %arg7[%c0_36, %c0_37] : memref<8x128xf32, #tpu.memory_space<vmem>>, vector<8x128xf32>
    tpu.vector_store %arg7[%c0_36, %c0_37], %96 {strides = array<i32>} : memref<8x128xf32, #tpu.memory_space<vmem>>, vector<8x128xf32>,
    %c0_38 = arith.constant 0 : index
    %c0_39 = arith.constant 0 : index
    %102 = vector.load %arg8[%c0_38, %c0_39] : memref<8x128xf32, #tpu.memory_space<vmem>>, vector<8x128xf32>
    tpu.vector_store %arg8[%c0_38, %c0_39], %93 {strides = array<i32>} : memref<8x128xf32, #tpu.memory_space<vmem>>, vector<8x128xf32>,
    %c0_i32_40 = arith.constant 0 : i32
    %103 = arith.cmpi eq, %arg1, %c0_i32_40 : i32
    %104 = arith.extui %103 : i1 to i32
    %c0_i32_41 = arith.constant 0 : i32
    %105 = arith.cmpi ne, %104, %c0_i32_41 : i32
    scf.if %105 {
      %c0_42 = arith.constant 0 : index
      %c0_43 = arith.constant 0 : index
      %106 = vector.load %arg6[%c0_42, %c0_43] : memref<8x128xf32, #tpu.memory_space<vmem>>, vector<8x128xf32>
      %cst_44 = arith.constant dense<0.000000e+00> : vector<128xf32>
      %107 = vector.multi_reduction <add>, %106, %cst_44 [0] : vector<8x128xf32> to vector<128xf32>
      %108 = vector.shape_cast %107 : vector<128xf32> to vector<1x128xf32>
      %c0_45 = arith.constant 0 : index
      %c0_46 = arith.constant 0 : index
      %c0_47 = arith.constant 0 : index
      %109 = vector.load %arg5[%c0_45, %c0_46, %c0_47] : memref<1x3x128xf32, #tpu.memory_space<vmem>>, vector<1x1x128xf32>
      %110 = vector.shape_cast %109 : vector<1x1x128xf32> to vector<1x128xf32>
      %111 = vector.shape_cast %108 : vector<1x128xf32> to vector<1x1x128xf32>
      tpu.vector_store %arg5[%c0_45, %c0_46, %c0_47], %111 {strides = array<i32>} : memref<1x3x128xf32, #tpu.memory_space<vmem>>, vector<1x1x128xf32>,
      %c0_48 = arith.constant 0 : index
      %c0_49 = arith.constant 0 : index
      %112 = vector.load %arg7[%c0_48, %c0_49] : memref<8x128xf32, #tpu.memory_space<vmem>>, vector<8x128xf32>
      %cst_50 = arith.constant dense<0.000000e+00> : vector<128xf32>
      %113 = vector.multi_reduction <add>, %112, %cst_50 [0] : vector<8x128xf32> to vector<128xf32>
      %114 = vector.shape_cast %113 : vector<128xf32> to vector<1x128xf32>
      %c0_51 = arith.constant 0 : index
      %c1 = arith.constant 1 : index
      %c0_52 = arith.constant 0 : index
      %115 = vector.load %arg5[%c0_51, %c1, %c0_52] : memref<1x3x128xf32, #tpu.memory_space<vmem>>, vector<1x1x128xf32>
      %116 = vector.shape_cast %115 : vector<1x1x128xf32> to vector<1x128xf32>
      %117 = vector.shape_cast %114 : vector<1x128xf32> to vector<1x1x128xf32>
      tpu.vector_store %arg5[%c0_51, %c1, %c0_52], %117 {strides = array<i32>} : memref<1x3x128xf32, #tpu.memory_space<vmem>>, vector<1x1x128xf32>,
      %c0_53 = arith.constant 0 : index
      %c0_54 = arith.constant 0 : index
      %118 = vector.load %arg8[%c0_53, %c0_54] : memref<8x128xf32, #tpu.memory_space<vmem>>, vector<8x128xf32>
      %cst_55 = arith.constant dense<0.000000e+00> : vector<128xf32>
      %119 = vector.multi_reduction <add>, %118, %cst_55 [0] : vector<8x128xf32> to vector<128xf32>
      %120 = vector.shape_cast %119 : vector<128xf32> to vector<1x128xf32>
      %c0_56 = arith.constant 0 : index
      %c2 = arith.constant 2 : index
      %c0_57 = arith.constant 0 : index
      %121 = vector.load %arg5[%c0_56, %c2, %c0_57] : memref<1x3x128xf32, #tpu.memory_space<vmem>>, vector<1x1x128xf32>
      %122 = vector.shape_cast %121 : vector<1x1x128xf32> to vector<1x128xf32>
      %123 = vector.shape_cast %120 : vector<1x128xf32> to vector<1x1x128xf32>
      tpu.vector_store %arg5[%c0_56, %c2, %c0_57], %123 {strides = array<i32>} : memref<1x3x128xf32, #tpu.memory_space<vmem>>, vector<1x1x128xf32>,
    } else {
    }
    return
  }
  func.func @transform_0(%arg0: i32, %arg1: i32) -> (i32, i32) {
    %c0_i32 = arith.constant 0 : i32
    %c0_i32_0 = arith.constant 0 : i32
    %c0_i32_1 = arith.constant 0 : i32
    return %c0_i32, %c0_i32_0 : i32, i32
  }
  func.func @transform_1(%arg0: i32, %arg1: i32) -> (i32, i32) {
    %c0_i32 = arith.constant 0 : i32
    %c0_i32_0 = arith.constant 0 : i32
    %c0_i32_1 = arith.constant 0 : i32
    return %c0_i32, %c0_i32_0 : i32, i32
  }
  func.func @transform_2(%arg0: i32, %arg1: i32) -> (i32, i32) {
    %c1_i32 = arith.constant 1 : i32
    %0 = arith.muli %arg0, %c1_i32 : i32
    %1 = arith.addi %0, %arg1 : i32
    %c0_i32 = arith.constant 0 : i32
    %c0_i32_0 = arith.constant 0 : i32
    return %c0_i32, %1 : i32, i32
  }
  func.func @transform_3(%arg0: i32, %arg1: i32) -> (i32, i32, i32) {
    %c0_i32 = arith.constant 0 : i32
    %c0_i32_0 = arith.constant 0 : i32
    %c0_i32_1 = arith.constant 0 : i32
    return %arg0, %c0_i32, %c0_i32_0 : i32, i32, i32
  }
}

</mosaic_0001>

<llo_original>
// kernel: hashnet_loss.1
$region0: #{hashnet_loss.1}
  #allocation0 [shape = 'u32[]', space=smem, size = 0x4, offset = 0x4, fixed_abs, tag = 'smem constant byte address 0x4 - core index']
  #allocation1 [shape = 'u32[144,128]{1,0:T(1,128)}', space=vmem, size = 0x12000, scoped, tag = 'internal scratch']
  #allocation2 [shape = 'f32[8,128]{1,0:T(8,128)}', space=vmem, size = 0x1000, scoped, tag = 'scratch operand']
  #allocation3 [shape = 'f32[8,128]{1,0:T(8,128)}', space=vmem, size = 0x1000, scoped, tag = 'scratch operand']
  #allocation4 [shape = 'f32[8,128]{1,0:T(8,128)}', space=vmem, size = 0x1000, scoped, tag = 'scratch operand']
  %s0 = inlined_call_operand.vmem [shape: bf16[8,16], index: 0, kind: input, shape index: {}]
  %s1 = inlined_call_operand.vmem [shape: bf16[8,16], index: 1, kind: input, shape index: {}]
  %s2 = inlined_call_operand.vmem [shape: bf16[32,1024], index: 2, kind: input, shape index: {}]
  %s3 = inlined_call_operand.vmem [shape: f32[2,3,128], index: 3, kind: output, shape index: {}]
  %s4 = sld [smem:[#allocation0]]
  $region76: #{hashnet_loss.1} parent=0
    _
  %s6 = ssub.s32 1, %s4
  %s7 = scalar_select 0, %s6, %s4
  $region1: #{hashnet_loss.1} parent=0
    #allocation5 [shape = 'u8[65536]{0}', space=vmem, size = 0x10000, scoped, tag = 'input window, operand 2']
    loop: start=0, step=1, limit=4
    $region2: #{hashnet_loss.1} parent=1 // loop_pre_header
      _
    $region3: #{hashnet_loss.1} parent=1 // loop_header
      %s9 = sphi 0, %s13
      %p10 = scmp.ge.s32.totalorder %s9, 4
      %s16 = sphi 0, %s28
      %s17 = sphi 0, %s24
      %s18 = sphi 0, %s16
      %s19 = sphi 0, %s17
      %s20 = sphi 0, %s18
      %s21 = sphi 0, %s19
      %s29 = sphi 0, %s29
      %s31 = sphi 0, %s29
      %s32 = sphi 0, %s31
      %s46 = sphi 0, %s32
      %s50 = sphi 0, %s50
      %s52 = sphi 0, %s50
      %s53 = sphi 0, %s52
      %s67 = sphi 0, %s53
      %s75 = sphi 0, %s77
      %s78 = sphi 0, %s75
      %s79 = sphi 0, %s78
      %s95 = sphi 0, %s79
      %s101 = sphi 0, %s103
      %s104 = sphi 0, %s101
      %s105 = sphi 0, %s104
      %s121 = sphi 0, %s105
    $region4: #{hashnet_loss.1} parent=1 // loop_header_branch
      %12 = sbr.rel (%p10) target = $region8
    $region5: #{hashnet_loss.1} parent=1 // loop_body
      %s14 = ssub.s32 %s9, 1
      %s15 = ssub.s32 %s9, 2
      %s22 = sadd.s32 1, %s17
      %p23 = scmp.ge.s32.totalorder %s22, 1
      %s24 = scalar_select %p23, 0, %s22
      %s25 = sadd.s32 1, %s16
      %s26 = scalar_select %p23, %s25, %s16
      %p27 = scmp.ge.s32.totalorder %s26, 2
      %s28 = scalar_select %p27, 0, %s26
      %s30 = sadd.s32 %s29, 1
      %p33 = scmp.eq.s32.totalorder %s9, 1
      %p34 = scmp.ne.s32.totalorder %s29, %s31
      %p35 = scmp.eq.s32.totalorder %s9, 0
      %p36 = por %p34, %p35
      %p37 = scmp.ne.s32.totalorder %s29, %s31
      %p38 = scmp.eq.s32.totalorder %s14, 1
      %p39 = por %p37, %p38
      %p40 = scmp.ne.s32.totalorder %s31, %s32
      %p41 = scmp.eq.s32.totalorder %s14, 0
      %p42 = por %p40, %p41
      %p43 = scmp.ne.s32.totalorder %s31, %s32
      %p44 = scmp.eq.s32.totalorder %s15, 1
      %p45 = por %p43, %p44
      %p47 = scmp.ne.s32.totalorder %s32, %s46
      %p48 = scmp.eq.s32.totalorder %s15, 0
      %p49 = por %p47, %p48
      %s51 = sadd.s32 %s50, 1
      %p54 = scmp.eq.s32.totalorder %s9, 1
      %p55 = scmp.ne.s32.totalorder %s50, %s52
      %p56 = scmp.eq.s32.totalorder %s9, 0
      %p57 = por %p55, %p56
      %p58 = scmp.ne.s32.totalorder %s50, %s52
      %p59 = scmp.eq.s32.totalorder %s14, 1
      %p60 = por %p58, %p59
      %p61 = scmp.ne.s32.totalorder %s52, %s53
      %p62 = scmp.eq.s32.totalorder %s14, 0
      %p63 = por %p61, %p62
      %p64 = scmp.ne.s32.totalorder %s52, %s53
      %p65 = scmp.eq.s32.totalorder %s15, 1
      %p66 = por %p64, %p65
      %p68 = scmp.ne.s32.totalorder %s53, %s67
      %p69 = scmp.eq.s32.totalorder %s15, 0
      %p70 = por %p68, %p69
      %s71 = sadd.s32 %s16, %s17
      %s72 = sadd.s32 %s28, %s24
      %s73 = ssub.s32 %s71, %s72
      %p74 = scmp.eq.s32.totalorder %s73, 0
      %s76 = sadd.s32 %s75, 1
      %s77 = scalar_select %p74, %s75, %s76
      %p80 = pneg %p74
      %p81 = scmp.eq.s32.totalorder %s9, 1
      %p82 = por %p80, %p81
      %p83 = scmp.ne.s32.totalorder %s75, %s78
      %p84 = scmp.eq.s32.totalorder %s9, 0
      %p85 = por %p83, %p84
      %p86 = scmp.ne.s32.totalorder %s75, %s78
      %p87 = scmp.eq.s32.totalorder %s14, 1
      %p88 = por %p86, %p87
      %p89 = scmp.ne.s32.totalorder %s78, %s79
      %p90 = scmp.eq.s32.totalorder %s14, 0
      %p91 = por %p89, %p90
      %p92 = scmp.ne.s32.totalorder %s78, %s79
      %p93 = scmp.eq.s32.totalorder %s15, 1
      %p94 = por %p92, %p93
      %p96 = scmp.ne.s32.totalorder %s79, %s95
      %p97 = scmp.eq.s32.totalorder %s15, 0
      %p98 = por %p96, %p97
      %s99 = ssub.s32 %s16, %s28
      %p100 = scmp.eq.s32.totalorder %s99, 0
      %s102 = sadd.s32 %s101, 1
      %s103 = scalar_select %p100, %s101, %s102
      %p106 = pneg %p100
      %p107 = scmp.eq.s32.totalorder %s9, 1
      %p108 = por %p106, %p107
      %p109 = scmp.ne.s32.totalorder %s101, %s104
      %p110 = scmp.eq.s32.totalorder %s9, 0
      %p111 = por %p109, %p110
      %p112 = scmp.ne.s32.totalorder %s101, %s104
      %p113 = scmp.eq.s32.totalorder %s14, 1
      %p114 = por %p112, %p113
      %p115 = scmp.ne.s32.totalorder %s104, %s105
      %p116 = scmp.eq.s32.totalorder %s14, 0
      %p117 = por %p115, %p116
      %p118 = scmp.ne.s32.totalorder %s104, %s105
      %p119 = scmp.eq.s32.totalorder %s15, 1
      %p120 = por %p118, %p119
      %p122 = scmp.ne.s32.totalorder %s105, %s121
      %p123 = scmp.eq.s32.totalorder %s15, 0
      %p124 = por %p122, %p123
      %p125 = scmp.le.s32.totalorder 1, %s9
      %p126 = scmp.lt.s32.totalorder %s9, 3
      %p127 = pnand %p125, %p126
      %p128 = pneg %p127
      // Predicated region
      $region9: #{hashnet_loss.1} parent=5 // pred_check
        _
      $region10: #{hashnet_loss.1} parent=5 // pred_check_branch
        %130 = sbr.rel (%p127) target = $region12
      $region11: #{hashnet_loss.1} parent=5 // pred_region
        %s131 = ssub.s32 %s9, 1
        // Predicated region
        $region13: #{hashnet_loss.1} parent=11 // pred_check
          %p132 = pneg %p42
        $region14: #{hashnet_loss.1} parent=11 // pred_check_branch
          %134 = sbr.rel (%p132) target = $region16
        $region15: #{hashnet_loss.1} parent=11 // pred_region
          _
        $region16: #{hashnet_loss.1} parent=11 // pred_fallthru
          _
        // Predicated region
        $region17: #{hashnet_loss.1} parent=11 // pred_check
          %p135 = pneg %p63
        $region18: #{hashnet_loss.1} parent=11 // pred_check_branch
          %137 = sbr.rel (%p135) target = $region20
        $region19: #{hashnet_loss.1} parent=11 // pred_region
          _
        $region20: #{hashnet_loss.1} parent=11 // pred_fallthru
          _
      $region12: #{hashnet_loss.1} parent=5 // pred_fallthru
        _
      %p138 = scmp.lt.s32.totalorder %s9, 2
      // Predicated region
      $region21: #{hashnet_loss.1} parent=5 // pred_check
        %p139 = pneg %p138
      $region22: #{hashnet_loss.1} parent=5 // pred_check_branch
        %141 = sbr.rel (%p139) target = $region24
      $region23: #{hashnet_loss.1} parent=5 // pred_region
        // Predicated region
        $region25: #{hashnet_loss.1} parent=23 // pred_check
          %p142 = pneg %p85
        $region26: #{hashnet_loss.1} parent=23 // pred_check_branch
          %144 = sbr.rel (%p142) target = $region28
        $region27: #{hashnet_loss.1} parent=23 // pred_region
          %s145 = sand.u32 %s75, 1
          %s146 = sand.u32 %s75, 1
          %s147 = smul.addr %s146, 64
          %s148 = scalar_lea.vmem [#allocation5], %s147
          %s149 = sadd.s32 %s16, %s17
          %s150 = smul.u32 4, %s149
          %s151 = smul.addr %s150, 4
          %s152 = scalar_lea.vmem %s2, %s151
          // Predicated region
          $region29: #{hashnet_loss.1} parent=27 // pred_check
            _
          $region30: #{hashnet_loss.1} parent=27 // pred_check_branch
            %154 = sbr.rel (0) target = $region32
          $region31: #{hashnet_loss.1} parent=27 // pred_region
            // Predicated region
            $region33: #{hashnet_loss.1} parent=31 // pred_check
              _
            $region34: #{hashnet_loss.1} parent=31 // pred_check_branch
              %156 = sbr.rel (0) target = $region36
            $region35: #{hashnet_loss.1} parent=31 // pred_region
              loop: start=0, step=1, limit=1
              $region37: #{hashnet_loss.1} parent=35 // loop_pre_header
                _
              $region38: #{hashnet_loss.1} parent=35 // loop_header
                %s158 = sphi 0, %s162
                %p159 = scmp.ge.s32.totalorder %s158, 1
                %s163 = sphi %s152, %s152
                %s164 = sphi %s148, %s148
              $region39: #{hashnet_loss.1} parent=35 // loop_header_branch
                %161 = sbr.rel (%p159) target = $region43
              $region40: #{hashnet_loss.1} parent=35 // loop_body
                %v165 = vld [vmem:[%s163] sm:$0xff]
                %166 = vst [vmem:[%s164] sm:$0xff] %v165
                %v167 = vld [vmem:[%s163 + $0x8] sm:$0xff]
                %168 = vst [vmem:[%s164 + $0x8] sm:$0xff] %v167
                %v169 = vld [vmem:[%s163 + $0x20] sm:$0xff]
                %170 = vst [vmem:[%s164 + $0x10] sm:$0xff] %v169
                %v171 = vld [vmem:[%s163 + $0x28] sm:$0xff]
                %172 = vst [vmem:[%s164 + $0x18] sm:$0xff] %v171
                %v173 = vld [vmem:[%s163 + $0x40] sm:$0xff]
                %174 = vst [vmem:[%s164 + $0x20] sm:$0xff] %v173
                %v175 = vld [vmem:[%s163 + $0x48] sm:$0xff]
                %176 = vst [vmem:[%s164 + $0x28] sm:$0xff] %v175
                %v177 = vld [vmem:[%s163 + $0x60] sm:$0xff]
                %178 = vst [vmem:[%s164 + $0x30] sm:$0xff] %v177
                %v179 = vld [vmem:[%s163 + $0x68] sm:$0xff]
                %180 = vst [vmem:[%s164 + $0x38] sm:$0xff] %v179
              $region41: #{hashnet_loss.1} parent=35 // loop_footer
                %s162 = sadd.s32 1, %s158
              $region42: #{hashnet_loss.1} parent=35 // loop_footer_branch
                %157 = sbr.rel target = $region38
              $region43: #{hashnet_loss.1} parent=35 // loop_exit
                _
            $region36: #{hashnet_loss.1} parent=31 // pred_fallthru
              _
            // Predicated region
            $region44: #{hashnet_loss.1} parent=31 // pred_check
              _
            $region45: #{hashnet_loss.1} parent=31 // pred_check_branch
              %182 = sbr.rel target = $region47
            $region46: #{hashnet_loss.1} parent=31 // pred_region
              _
            $region47: #{hashnet_loss.1} parent=31 // pred_fallthru
              _
          $region32: #{hashnet_loss.1} parent=27 // pred_fallthru
            _
          %183 = vnop
        $region28: #{hashnet_loss.1} parent=23 // pred_fallthru
          _
      $region24: #{hashnet_loss.1} parent=5 // pred_fallthru
        _
      %p184 = scmp.le.s32.totalorder 1, %s9
      %p185 = scmp.lt.s32.totalorder %s9, 3
      %p186 = pnand %p184, %p185
      %p187 = pneg %p186
      // Predicated region
      $region48: #{hashnet_loss.1} parent=5 // pred_check
        _
      $region49: #{hashnet_loss.1} parent=5 // pred_check_branch
        %189 = sbr.rel (%p186) target = $region51
      $region50: #{hashnet_loss.1} parent=5 // pred_region
        %s190 = ssub.s32 %s9, 1
        %s191 = sand.u32 %s78, 1
        %s192 = sand.u32 %s78, 1
        %s193 = smul.addr %s192, 64
        %s194 = scalar_lea.vmem [#allocation5], %s193
        // Predicated region
        $region52: #{hashnet_loss.1} parent=50 // pred_check
          %p195 = pneg %p91
        $region53: #{hashnet_loss.1} parent=50 // pred_check_branch
          %197 = sbr.rel (%p195) target = $region55
        $region54: #{hashnet_loss.1} parent=50 // pred_region
          _
        $region55: #{hashnet_loss.1} parent=50 // pred_fallthru
          _
        %p198 = pneg %p42
        %p199 = pneg %p39
        %p200 = pneg %p63
        %p201 = pneg %p60
        %s202 = sand.u32 %s78, 1
        %s203 = sand.u32 %s78, 1
        %s204 = smul.addr %s203, 64
        %s205 = scalar_lea.vmem [#allocation5], %s204
        %p206 = pneg %p91
        %p207 = pneg %p88
        %p208 = pneg %p117
        %p209 = pneg %p114
        %p210 = scmp.lt.s32.totalorder %s18, 1
        %s211 = scalar_select %p210, %s18, 1
        %s212 = smul.addr %s211, 4
        %s213 = scalar_lea.vmem %s3, %s212
        %s214 = sadd.s32 %s18, %s19
        %s215 = smul.u32 4, %s214
        %p216 = scmp.lt.s32.totalorder %s18, 1
        %s217 = scalar_select %p216, %s18, 1
        %s218 = smul.addr %s217, 4
        %s219 = scalar_lea.vmem %s3, %s218
        %p221 = scmp.eq.s32.totalorder %s19, 0
        // Predicated region
        $region56: #{hashnet_loss.1} parent=50 // pred_check
          %p222 = pneg %p221
        $region57: #{hashnet_loss.1} parent=50 // pred_check_branch
          %224 = sbr.rel (%p222) target = $region59
        $region58: #{hashnet_loss.1} parent=50 // pred_region
          %225 = vst [vmem:[#allocation2] sm:$0xff] 0.0
          %226 = vst [vmem:[#allocation3] sm:$0xff] 0.0
          %227 = vst [vmem:[#allocation4] sm:$0xff] 0.0
        $region59: #{hashnet_loss.1} parent=50 // pred_fallthru
          _
        %v228 = vld [vmem:[%s194] sm:$0xff]
        %v229 = vld [vmem:[%s194 + $0x8] sm:$0xff]
        %v230 = vld [vmem:[%s194 + $0x10] sm:$0xff]
        %v231 = vld [vmem:[%s194 + $0x18] sm:$0xff]
        %v232 = vld [vmem:[%s194 + $0x20] sm:$0xff]
        %v233 = vld [vmem:[%s194 + $0x28] sm:$0xff]
        %v234 = vld [vmem:[%s194 + $0x30] sm:$0xff]
        %v235 = vld [vmem:[%s194 + $0x38] sm:$0xff]
        %v236 = vld [vmem:[%s0] sm:$0xf]
        %v241 = vunpack.c.l.b16 %v228
        %v242 = vunpack.c.h.b16 %v228
        %v243 = vunpack.c.l.b16 %v229
        %v244 = vunpack.c.h.b16 %v229
        %v245 = vunpack.c.l.b16 %v230
        %v246 = vunpack.c.h.b16 %v230
        %v247 = vunpack.c.l.b16 %v231
        %v248 = vunpack.c.h.b16 %v231
        %v249 = vpack.c.b16 %v245, %v241
        %v250 = vpack.c.b16 %v246, %v242
        %v251 = vpack.c.b16 %v247, %v243
        %v252 = vpack.c.b16 %v248, %v244
        %vm257 = vcmask 130048
        %v259 = vsel %vm257, %v236, 0
        %261 = vmatprep.subr.bf16.mxu0 0
        %262 = vmatpush1.bf16.msra.mxu0 0
        %263 = vmatprep.subr.bf16.mxu0 0
        %264 = vmatpush1.bf16.msra.mxu0 0
        %265 = vmatprep.subr.bf16.mxu0 0
        %266 = vmatpush1.bf16.msra.mxu0 0
        %267 = vmatprep.subr.bf16.mxu0 0
        %268 = vmatpush1.bf16.msra.mxu0 0
        %269 = vmatprep.subr.bf16.mxu0 0
        %270 = vmatpush1.bf16.msra.mxu0 0
        %271 = vmatprep.subr.bf16.mxu0 0
        %272 = vmatpush1.bf16.msra.mxu0 0
        %273 = vmatprep.subr.bf16.mxu0 0
        %274 = vmatpush1.bf16.msra.mxu0 0
        %275 = vmatprep.subr.bf16.mxu0 %v250
        %276 = vmatpush1.bf16.msra.mxu0 %v249
        %277 = vmatprep.subr.bf16.mxu0 0
        %278 = vmatpush2.bf16.msra.mxu0 0
        %279 = vmatprep.subr.bf16.mxu0 0
        %280 = vmatpush2.bf16.msra.mxu0 0
        %281 = vmatprep.subr.bf16.mxu0 0
        %282 = vmatpush2.bf16.msra.mxu0 0
        %283 = vmatprep.subr.bf16.mxu0 0
        %284 = vmatpush2.bf16.msra.mxu0 0
        %285 = vmatprep.subr.bf16.mxu0 0
        %286 = vmatpush2.bf16.msra.mxu0 0
        %287 = vmatprep.subr.bf16.mxu0 0
        %288 = vmatpush2.bf16.msra.mxu0 0
        %289 = vmatprep.subr.bf16.mxu0 0
        %290 = vmatpush2.bf16.msra.mxu0 0
        %291 = vmatprep.subr.bf16.mxu0 0
        %292 = vmatpush2.bf16.msra.mxu0 0
        %293 = vmatprep.mubr.bf16.mxu0 0
        %294 = vmatmul.mubr.bf16.gmra.mxu0 %v259
        %v295 = vpop.f32.mrf.mxu0
        %v296 = vadd.f32 0.0, %v295
        %v297 = vpop.f32.mrf.mxu0
        %v298 = vadd.f32 0.0, %v297
        %v299 = vpop.f32.mrf.mxu0
        %v300 = vpop.f32.mrf.mxu0
        %301 = vdwg.mxu0
        %302 = vmatprep.subr.bf16.mxu0 0
        %303 = vmatpush1.bf16.msra.mxu0 0
        %304 = vmatprep.subr.bf16.mxu0 0
        %305 = vmatpush1.bf16.msra.mxu0 0
        %306 = vmatprep.subr.bf16.mxu0 0
        %307 = vmatpush1.bf16.msra.mxu0 0
        %308 = vmatprep.subr.bf16.mxu0 0
        %309 = vmatpush1.bf16.msra.mxu0 0
        %310 = vmatprep.subr.bf16.mxu0 0
        %311 = vmatpush1.bf16.msra.mxu0 0
        %312 = vmatprep.subr.bf16.mxu0 0
        %313 = vmatpush1.bf16.msra.mxu0 0
        %314 = vmatprep.subr.bf16.mxu0 0
        %315 = vmatpush1.bf16.msra.mxu0 0
        %316 = vmatprep.subr.bf16.mxu0 %v252
        %317 = vmatpush1.bf16.msra.mxu0 %v251
        %318 = vmatprep.subr.bf16.mxu0 0
        %319 = vmatpush2.bf16.msra.mxu0 0
        %320 = vmatprep.subr.bf16.mxu0 0
        %321 = vmatpush2.bf16.msra.mxu0 0
        %322 = vmatprep.subr.bf16.mxu0 0
        %323 = vmatpush2.bf16.msra.mxu0 0
        %324 = vmatprep.subr.bf16.mxu0 0
        %325 = vmatpush2.bf16.msra.mxu0 0
        %326 = vmatprep.subr.bf16.mxu0 0
        %327 = vmatpush2.bf16.msra.mxu0 0
        %328 = vmatprep.subr.bf16.mxu0 0
        %329 = vmatpush2.bf16.msra.mxu0 0
        %330 = vmatprep.subr.bf16.mxu0 0
        %331 = vmatpush2.bf16.msra.mxu0 0
        %332 = vmatprep.subr.bf16.mxu0 0
        %333 = vmatpush2.bf16.msra.mxu0 0
        %334 = vmatprep.mubr.bf16.mxu0 0
        %335 = vmatmul.mubr.bf16.gmra.mxu0 %v259
        %v336 = vpop.f32.mrf.mxu0
        %v337 = vadd.f32 0.0, %v336
        %v338 = vpop.f32.mrf.mxu0
        %v339 = vadd.f32 0.0, %v338
        %v340 = vpop.f32.mrf.mxu0
        %v341 = vpop.f32.mrf.mxu0
        %342 = vdwg.mxu0
        %v343 = vld [vmem:[%s1] sm:$0xf]
        %v348 = vunpack.c.l.b16 %v232
        %v349 = vunpack.c.h.b16 %v232
        %v350 = vunpack.c.l.b16 %v233
        %v351 = vunpack.c.h.b16 %v233
        %v352 = vunpack.c.l.b16 %v234
        %v353 = vunpack.c.h.b16 %v234
        %v354 = vunpack.c.l.b16 %v235
        %v355 = vunpack.c.h.b16 %v235
        %v356 = vpack.c.b16 %v352, %v348
        %v357 = vpack.c.b16 %v353, %v349
        %v358 = vpack.c.b16 %v354, %v350
        %v359 = vpack.c.b16 %v355, %v351
        %v365 = vsel %vm257, %v343, 0
        %367 = vmatprep.subr.bf16.mxu0 0
        %368 = vmatpush1.bf16.msra.mxu0 0
        %369 = vmatprep.subr.bf16.mxu0 0
        %370 = vmatpush1.bf16.msra.mxu0 0
        %371 = vmatprep.subr.bf16.mxu0 0
        %372 = vmatpush1.bf16.msra.mxu0 0
        %373 = vmatprep.subr.bf16.mxu0 0
        %374 = vmatpush1.bf16.msra.mxu0 0
        %375 = vmatprep.subr.bf16.mxu0 0
        %376 = vmatpush1.bf16.msra.mxu0 0
        %377 = vmatprep.subr.bf16.mxu0 0
        %378 = vmatpush1.bf16.msra.mxu0 0
        %379 = vmatprep.subr.bf16.mxu0 0
        %380 = vmatpush1.bf16.msra.mxu0 0
        %381 = vmatprep.subr.bf16.mxu0 %v357
        %382 = vmatpush1.bf16.msra.mxu0 %v356
        %383 = vmatprep.subr.bf16.mxu0 0
        %384 = vmatpush2.bf16.msra.mxu0 0
        %385 = vmatprep.subr.bf16.mxu0 0
        %386 = vmatpush2.bf16.msra.mxu0 0
        %387 = vmatprep.subr.bf16.mxu0 0
        %388 = vmatpush2.bf16.msra.mxu0 0
        %389 = vmatprep.subr.bf16.mxu0 0
        %390 = vmatpush2.bf16.msra.mxu0 0
        %391 = vmatprep.subr.bf16.mxu0 0
        %392 = vmatpush2.bf16.msra.mxu0 0
        %393 = vmatprep.subr.bf16.mxu0 0
        %394 = vmatpush2.bf16.msra.mxu0 0
        %395 = vmatprep.subr.bf16.mxu0 0
        %396 = vmatpush2.bf16.msra.mxu0 0
        %397 = vmatprep.subr.bf16.mxu0 0
        %398 = vmatpush2.bf16.msra.mxu0 0
        %399 = vmatprep.mubr.bf16.mxu0 0
        %400 = vmatmul.mubr.bf16.gmra.mxu0 %v365
        %v401 = vpop.f32.mrf.mxu0
        %v402 = vadd.f32 0.0, %v401
        %v403 = vpop.f32.mrf.mxu0
        %v404 = vadd.f32 0.0, %v403
        %v405 = vpop.f32.mrf.mxu0
        %v406 = vpop.f32.mrf.mxu0
        %407 = vdwg.mxu0
        %408 = vmatprep.subr.bf16.mxu0 0
        %409 = vmatpush1.bf16.msra.mxu0 0
        %410 = vmatprep.subr.bf16.mxu0 0
        %411 = vmatpush1.bf16.msra.mxu0 0
        %412 = vmatprep.subr.bf16.mxu0 0
        %413 = vmatpush1.bf16.msra.mxu0 0
        %414 = vmatprep.subr.bf16.mxu0 0
        %415 = vmatpush1.bf16.msra.mxu0 0
        %416 = vmatprep.subr.bf16.mxu0 0
        %417 = vmatpush1.bf16.msra.mxu0 0
        %418 = vmatprep.subr.bf16.mxu0 0
        %419 = vmatpush1.bf16.msra.mxu0 0
        %420 = vmatprep.subr.bf16.mxu0 0
        %421 = vmatpush1.bf16.msra.mxu0 0
        %422 = vmatprep.subr.bf16.mxu0 %v359
        %423 = vmatpush1.bf16.msra.mxu0 %v358
        %424 = vmatprep.subr.bf16.mxu0 0
        %425 = vmatpush2.bf16.msra.mxu0 0
        %426 = vmatprep.subr.bf16.mxu0 0
        %427 = vmatpush2.bf16.msra.mxu0 0
        %428 = vmatprep.subr.bf16.mxu0 0
        %429 = vmatpush2.bf16.msra.mxu0 0
        %430 = vmatprep.subr.bf16.mxu0 0
        %431 = vmatpush2.bf16.msra.mxu0 0
        %432 = vmatprep.subr.bf16.mxu0 0
        %433 = vmatpush2.bf16.msra.mxu0 0
        %434 = vmatprep.subr.bf16.mxu0 0
        %435 = vmatpush2.bf16.msra.mxu0 0
        %436 = vmatprep.subr.bf16.mxu0 0
        %437 = vmatpush2.bf16.msra.mxu0 0
        %438 = vmatprep.subr.bf16.mxu0 0
        %439 = vmatpush2.bf16.msra.mxu0 0
        %440 = vmatprep.mubr.bf16.mxu0 0
        %441 = vmatmul.mubr.bf16.gmra.mxu0 %v365
        %v442 = vpop.f32.mrf.mxu0
        %v443 = vadd.f32 0.0, %v442
        %v444 = vpop.f32.mrf.mxu0
        %v445 = vadd.f32 0.0, %v444
        %v446 = vpop.f32.mrf.mxu0
        %v447 = vpop.f32.mrf.mxu0
        %448 = vdwg.mxu0
        %v449 = vld [vmem:[#allocation2] sm:$0xff]
        %v450 = vld [vmem:[#allocation3] sm:$0xff]
        %v451 = vld [vmem:[#allocation4] sm:$0xff]
        %vm452 = vcmp.gt.f32.partialorder %v402, 0.0
        %v453 = vand.u32 2147483647, %v296
        %v454 = vsub.f32 0.0, %v453
        %v455 = vmul.f32 %v454, 1.442695
        %v456 = vpow.pop %v455
        %v457 = vadd.f32 %v456, 1.0
        %v458 = vlog2.pop %v457
        %v459 = vmul.f32 %v458, 0.6931472
        %v460 = vmul.f32 -0.5, %v456
        %v461 = vadd.f32 %v460, 1.0
        %v462 = vmul.f32 %v461, %v456
        %v463 = vand.u32 2147483647, %v456
        %vm464 = vcmp.lt.f32.partialorder %v463, 0.0004427343
        %v465 = vsel %vm464, %v462, %v459
        %v466 = vmax.f32 %v296, 0.0
        %v467 = vadd.f32 %v465, %v466
        %v468 = vsel %vm452, %v296, 0.0
        %v469 = vsub.f32 %v467, %v468
        %v470 = vadd.f32 %v451, %v469
        %v471 = vsel %vm452, %v469, 0.0
        %v472 = vadd.f32 %v450, %v471
        %v473 = vsel %vm452, 1, 0
        %v474 = vcvt.s32.f32 %v473
        %v475 = vadd.f32 %v449, %v474
        %vm476 = vcmp.gt.f32.partialorder %v404, 0.0
        %v477 = vand.u32 2147483647, %v298
        %v478 = vsub.f32 0.0, %v477
        %v479 = vmul.f32 %v478, 1.442695
        %v480 = vpow.pop %v479
        %v481 = vadd.f32 %v480, 1.0
        %v482 = vlog2.pop %v481
        %v483 = vmul.f32 %v482, 0.6931472
        %v484 = vmul.f32 -0.5, %v480
        %v485 = vadd.f32 %v484, 1.0
        %v486 = vmul.f32 %v485, %v480
        %v487 = vand.u32 2147483647, %v480
        %vm488 = vcmp.lt.f32.partialorder %v487, 0.0004427343
        %v489 = vsel %vm488, %v486, %v483
        %v490 = vmax.f32 %v298, 0.0
        %v491 = vadd.f32 %v489, %v490
        %v492 = vsel %vm476, %v298, 0.0
        %v493 = vsub.f32 %v491, %v492
        %v494 = vadd.f32 %v470, %v493
        %v495 = vsel %vm476, %v493, 0.0
        %v496 = vadd.f32 %v472, %v495
        %v497 = vsel %vm476, 1, 0
        %v498 = vcvt.s32.f32 %v497
        %v499 = vadd.f32 %v475, %v498
        %vm500 = vcmp.gt.f32.partialorder %v443, 0.0
        %v501 = vand.u32 2147483647, %v337
        %v502 = vsub.f32 0.0, %v501
        %v503 = vmul.f32 %v502, 1.442695
        %v504 = vpow.pop %v503
        %v505 = vadd.f32 %v504, 1.0
        %v506 = vlog2.pop %v505
        %v507 = vmul.f32 %v506, 0.6931472
        %v508 = vmul.f32 -0.5, %v504
        %v509 = vadd.f32 %v508, 1.0
        %v510 = vmul.f32 %v509, %v504
        %v511 = vand.u32 2147483647, %v504
        %vm512 = vcmp.lt.f32.partialorder %v511, 0.0004427343
        %v513 = vsel %vm512, %v510, %v507
        %v514 = vmax.f32 %v337, 0.0
        %v515 = vadd.f32 %v513, %v514
        %v516 = vsel %vm500, %v337, 0.0
        %v517 = vsub.f32 %v515, %v516
        %v518 = vadd.f32 %v494, %v517
        %v519 = vsel %vm500, %v517, 0.0
        %v520 = vadd.f32 %v496, %v519
        %v521 = vsel %vm500, 1, 0
        %v522 = vcvt.s32.f32 %v521
        %v523 = vadd.f32 %v499, %v522
        %vm524 = vcmp.gt.f32.partialorder %v445, 0.0
        %v525 = vand.u32 2147483647, %v339
        %v526 = vsub.f32 0.0, %v525
        %v527 = vmul.f32 %v526, 1.442695
        %v528 = vpow.pop %v527
        %v529 = vadd.f32 %v528, 1.0
        %v530 = vlog2.pop %v529
        %v531 = vmul.f32 %v530, 0.6931472
        %v532 = vmul.f32 -0.5, %v528
        %v533 = vadd.f32 %v532, 1.0
        %v534 = vmul.f32 %v533, %v528
        %v535 = vand.u32 2147483647, %v528
        %vm536 = vcmp.lt.f32.partialorder %v535, 0.0004427343
        %v537 = vsel %vm536, %v534, %v531
        %v538 = vmax.f32 %v339, 0.0
        %v539 = vadd.f32 %v537, %v538
        %v540 = vsel %vm524, %v339, 0.0
        %v541 = vsub.f32 %v539, %v540
        %v542 = vadd.f32 %v518, %v541
        %v543 = vsel %vm524, %v541, 0.0
        %v544 = vadd.f32 %v520, %v543
        %v545 = vsel %vm524, 1, 0
        %v546 = vcvt.s32.f32 %v545
        %v547 = vadd.f32 %v523, %v546
        %548 = vst [vmem:[#allocation2] sm:$0xff] %v547
        %549 = vst [vmem:[#allocation3] sm:$0xff] %v544
        %550 = vst [vmem:[#allocation4] sm:$0xff] %v542
        // Predicated region
        $region60: #{hashnet_loss.1} parent=50 // pred_check
          %p551 = pneg %p221
        $region61: #{hashnet_loss.1} parent=50 // pred_check_branch
          %553 = sbr.rel (%p551) target = $region63
        $region62: #{hashnet_loss.1} parent=50 // pred_region
          %v554 = vld [vmem:[#allocation2] sm:$0xff]
          %v555 = vrot.slane %v554, 4
          %v556 = vadd.f32 %v554, %v555
          %v557 = vrot.slane %v556, 2
          %v558 = vadd.f32 %v556, %v557
          %v559 = vrot.slane %v558, 1
          %v560 = vadd.f32 %v558, %v559
          %561 = vst [vmem:[%s219] sm:$0x1] %v560
          %v562 = vld [vmem:[#allocation3] sm:$0xff]
          %v563 = vrot.slane %v562, 4
          %v564 = vadd.f32 %v562, %v563
          %v565 = vrot.slane %v564, 2
          %v566 = vadd.f32 %v564, %v565
          %v567 = vrot.slane %v566, 1
          %v568 = vadd.f32 %v566, %v567
          %569 = vst [vmem:[%s219 + $0x1] sm:$0x1] %v568
          %v570 = vld [vmem:[#allocation4] sm:$0xff]
          %v571 = vrot.slane %v570, 4
          %v572 = vadd.f32 %v570, %v571
          %v573 = vrot.slane %v572, 2
          %v574 = vadd.f32 %v572, %v573
          %v575 = vrot.slane %v574, 1
          %v576 = vadd.f32 %v574, %v575
          %577 = vst [vmem:[%s219 + $0x2] sm:$0x1] %v576
        $region63: #{hashnet_loss.1} parent=50 // pred_fallthru
          _
        %p578 = scmp.lt.s32.totalorder %s18, 1
        %s579 = scalar_select %p578, %s18, 1
        %s580 = smul.addr %s579, 4
        %s581 = scalar_lea.vmem %s3, %s580
        // Predicated region
        $region64: #{hashnet_loss.1} parent=50 // pred_check
          %p582 = pneg %p114
        $region65: #{hashnet_loss.1} parent=50 // pred_check_branch
          %584 = sbr.rel (%p582) target = $region67
        $region66: #{hashnet_loss.1} parent=50 // pred_region
          _
        $region67: #{hashnet_loss.1} parent=50 // pred_fallthru
          _
      $region51: #{hashnet_loss.1} parent=5 // pred_fallthru
        _
      %p585 = scmp.le.s32.totalorder 2, %s9
      // Predicated region
      $region68: #{hashnet_loss.1} parent=5 // pred_check
        %p586 = pneg %p585
      $region69: #{hashnet_loss.1} parent=5 // pred_check_branch
        %588 = sbr.rel (%p586) target = $region71
      $region70: #{hashnet_loss.1} parent=5 // pred_region
        %s589 = ssub.s32 %s9, 2
        // Predicated region
        $region72: #{hashnet_loss.1} parent=70 // pred_check
          %p590 = pneg %p120
        $region73: #{hashnet_loss.1} parent=70 // pred_check_branch
          %592 = sbr.rel (%p590) target = $region75
        $region74: #{hashnet_loss.1} parent=70 // pred_region
          %p593 = scmp.lt.s32.totalorder %s20, 1
          %s594 = scalar_select %p593, %s20, 1
          %s595 = smul.addr %s594, 4
          %s596 = scalar_lea.vmem %s3, %s595
        $region75: #{hashnet_loss.1} parent=70 // pred_fallthru
          _
      $region71: #{hashnet_loss.1} parent=5 // pred_fallthru
        _
    $region6: #{hashnet_loss.1} parent=1 // loop_footer
      %s13 = sadd.s32 1, %s9
    $region7: #{hashnet_loss.1} parent=1 // loop_footer_branch
      %8 = sbr.rel target = $region3
    $region8: #{hashnet_loss.1} parent=1 // loop_exit
      _

</llo_original>
